<compile_context>
chip_gen: v6e
topology: v6e:2x2x1
jax: 0.10.0
libtpu: 0.0.40
codegen_flags: <defaults>
</compile_context>

<pallas_src>
import functools

import numpy as np

import jax
import jax.numpy as jnp
from jax.experimental import pallas as pl
from jax.experimental.pallas import tpu as pltpu


def _gating_kernel(x_ref, w_ih_ref, w_hh_ref, b_ref, w_fc_ref, b_fc_ref,
                   out_ref, *, T, H, matmul_dtype):
    """Full LSTM recurrence + FC + softmax for one batch tile.

    x_ref   : (T, B, Dp)  time-major input, D zero-padded to Dp (sublane mult.)
    w_ih_ref: (Dp, 4H)    input->gates weights, gate order [i, f, o, g],
                          g-columns pre-scaled by 2 (tanh-via-sigmoid identity)
    w_hh_ref: (H, 4H)     hidden->gates weights, same permutation / scaling
    b_ref   : (1, 4H)     combined bias (b_ih + b_hh), same perm / scaling, f32
    w_fc_ref: (H, E)      FC weights (pre-transposed)
    b_fc_ref: (1, E)      FC bias
    out_ref : (B, E)      softmax gating weights
    """
    B = x_ref.shape[1]
    Dp = x_ref.shape[2]

    def mm(a, b):
        # f32 accumulation always; operands optionally bf16 (v6e/v7x MXU;
        # v5e's MXU is also bf16-capable — only its VPU/EUP math must stay f32,
        # which it does: state, biases, activations are all f32 here).
        return jnp.dot(a.astype(matmul_dtype), b.astype(matmul_dtype),
                       preferred_element_type=jnp.float32)

    # Hoisted input projection: one big MXU matmul, bias folded in.
    # (T, B, Dp) -> (T*B, Dp) is a layout-preserving leading-dim merge.
    xg = mm(x_ref[...].reshape(T * B, Dp), w_ih_ref[...]) + b_ref[...]  # (T*B, 4H) f32

    w_hh = w_hh_ref[...]

    # h0 = c0 = 0 (matches the zero-initialized hidden of the PyTorch module).
    h = jnp.zeros((B, H), jnp.float32)
    c = jnp.zeros((B, H), jnp.float32)

    # Fully unrolled recurrence: only one MXU push (h @ W_hh) + one EUP
    # sigmoid + one EUP tanh per step are on the serial chain; h/c live in
    # vregs. (If T grows beyond ~32, switch to lax.fori_loop(unroll=4..8).)
    for t in range(T):
        gates = xg[t * B:(t + 1) * B, :] + mm(h, w_hh)        # (B, 4H)
        s = jax.nn.sigmoid(gates)                              # one full-width EUP op
        i_g = s[:, :H]
        f_g = s[:, H:2 * H]
        o_g = s[:, 2 * H:3 * H]
        g_g = 2.0 * s[:, 3 * H:] - 1.0                         # tanh(x) = 2*sigmoid(2x) - 1
        c = f_g * c + i_g * g_g
        h = o_g * jnp.tanh(c)

    # FC head on the last hidden state, softmax over experts (dim=1).
    # Max-subtraction kept for robustness (logits are bounded here, but the
    # tail XLU reduce is negligible). Exact division => rows sum to 1 exactly.
    logits = mm(h, w_fc_ref[...]) + b_fc_ref[...]              # (B, E)
    m = jnp.max(logits, axis=-1, keepdims=True)
    e = jnp.exp(logits - m)
    out_ref[...] = e / jnp.sum(e, axis=-1, keepdims=True)


def prepare_gating_params(w_ih, w_hh, b_ih, b_hh, w_fc, b_fc,
                          *, use_bf16_matmul=False):
    """One-time host-side parameter prep (run ONCE, reuse across calls).

    PyTorch layouts in: w_ih (4H, D), w_hh (4H, H), b_ih/b_hh (4H,) with gate
    order [i, f, g, o]; w_fc (E, H), b_fc (E,).
    """
    w_ih = np.asarray(w_ih, np.float32)
    w_hh = np.asarray(w_hh, np.float32)
    b_ih = np.asarray(b_ih, np.float32)
    b_hh = np.asarray(b_hh, np.float32)
    w_fc = np.asarray(w_fc, np.float32)
    b_fc = np.asarray(b_fc, np.float32)

    H4, D = w_ih.shape
    H = H4 // 4
    E = w_fc.shape[0]

    # Gate order [i, f, g, o] -> [i, f, o, g]: i|f|o activate with ONE sigmoid.
    perm = np.concatenate([np.arange(0, 2 * H),       # i, f
                           np.arange(3 * H, 4 * H),   # o
                           np.arange(2 * H, 3 * H)])  # g
    # Pre-scale g rows by 2 so tanh(x) can be computed as 2*sigmoid(2x) - 1
    # with the SAME full-width sigmoid (removes one EUP launch per timestep).
    scale = np.ones((4 * H, 1), np.float32)
    scale[3 * H:] = 2.0

    w_ih_p = w_ih[perm] * scale                        # (4H, D)
    w_hh_p = w_hh[perm] * scale                        # (4H, H)
    b = ((b_ih + b_hh)[perm] * scale[:, 0]).reshape(1, 4 * H)

    # Zero-pad D to a sublane multiple so the hoisted projection's weight tile
    # is aligned (padding columns of x are also zero, so the result is exact).
    D_pad = ((D + 7) // 8) * 8
    w_ih_t = np.zeros((D_pad, 4 * H), np.float32)
    w_ih_t[:D] = w_ih_p.T
    w_hh_t = np.ascontiguousarray(w_hh_p.T)            # (H, 4H)
    w_fc_t = np.ascontiguousarray(w_fc.T)              # (H, E)
    b_fc_2d = b_fc.reshape(1, E)

    mm_dtype = jnp.bfloat16 if use_bf16_matmul else jnp.float32
    return dict(
        w_ih_t=jnp.asarray(w_ih_t, mm_dtype),
        w_hh_t=jnp.asarray(w_hh_t, mm_dtype),
        b=jnp.asarray(b, jnp.float32),
        w_fc_t=jnp.asarray(w_fc_t, mm_dtype),
        b_fc=jnp.asarray(b_fc_2d, jnp.float32),
        H=H, D=D, D_pad=D_pad, E=E,
        matmul_dtype=mm_dtype,
    )


def gating_forward(x_btd, params, *, batch_tile=None):
    """x_btd: (B, T, D) float32 (PyTorch batch_first). Returns (B, E) softmax weights.

    batch_tile=None  -> single gridless call (right choice on v5e/v6e, 1 TC).
    batch_tile=K     -> grid over batch with "parallel" semantics (v7x: both
                        TensorCores run independent batch slices). K % 8 == 0.
    """
    B, T, D = x_btd.shape
    H, E, D_pad = params["H"], params["E"], params["D_pad"]
    assert D == params["D"]

    # Per-call input prep is kept minimal: a single tiny fused transpose(+pad)
    # of (B, T, D) to time-major (T, B, D_pad). All weight prep is one-time.
    x_tm = jnp.transpose(x_btd, (1, 0, 2))
    if D_pad != D:
        x_tm = jnp.pad(x_tm, ((0, 0), (0, 0), (0, D_pad - D)))

    kernel = functools.partial(_gating_kernel, T=T, H=H,
                               matmul_dtype=params["matmul_dtype"])
    args = (x_tm, params["w_ih_t"], params["w_hh_t"], params["b"],
            params["w_fc_t"], params["b_fc"])
    out_shape = jax.ShapeDtypeStruct((B, E), jnp.float32)

    if batch_tile is None or batch_tile >= B:
        vmem = pltpu.MemorySpace.VMEM
        return pl.pallas_call(
            kernel,
            out_shape=out_shape,
            in_specs=[pl.BlockSpec(memory_space=vmem)] * 6,
            out_specs=pl.BlockSpec(memory_space=vmem),
        )(*args)

    # v7x dual-TensorCore path: batch-tile grid axis marked "parallel".
    assert B % batch_tile == 0 and batch_tile % 8 == 0
    H4 = 4 * H
    return pl.pallas_call(
        kernel,
        out_shape=out_shape,
        grid=(B // batch_tile,),
        in_specs=[
            pl.BlockSpec((T, batch_tile, D_pad), lambda i: (0, i, 0)),
            pl.BlockSpec((D_pad, H4), lambda i: (0, 0)),
            pl.BlockSpec((H, H4), lambda i: (0, 0)),
            pl.BlockSpec((1, H4), lambda i: (0, 0)),
            pl.BlockSpec((H, E), lambda i: (0, 0)),
            pl.BlockSpec((1, E), lambda i: (0, 0)),
        ],
        out_specs=pl.BlockSpec((batch_tile, E), lambda i: (i, 0)),
        compiler_params=pltpu.CompilerParams(
            dimension_semantics=("parallel",)),
    )(*args)


def gating_reference(x_btd, w_ih, w_hh, b_ih, b_hh, w_fc, b_fc):
    """Pure-JAX reference matching torch.nn.LSTM + Linear + Softmax semantics
    (original PyTorch gate order [i, f, g, o], un-permuted weights)."""
    B, T, D = x_btd.shape
    H = w_hh.shape[1]
    h = jnp.zeros((B, H), jnp.float32)
    c = jnp.zeros((B, H), jnp.float32)
    for t in range(T):
        x_t = x_btd[:, t, :]
        gates = x_t @ w_ih.T + b_ih + h @ w_hh.T + b_hh
        i_g = jax.nn.sigmoid(gates[:, 0 * H:1 * H])
        f_g = jax.nn.sigmoid(gates[:, 1 * H:2 * H])
        g_g = jnp.tanh(gates[:, 2 * H:3 * H])
        o_g = jax.nn.sigmoid(gates[:, 3 * H:4 * H])
        c = f_g * c + i_g * g_g
        h = o_g * jnp.tanh(c)
    logits = h @ w_fc.T + b_fc
    return jax.nn.softmax(logits, axis=1)


if __name__ == "__main__":
    # Small, LSTM-consistent demo shapes.
    B, T = 16, 6              # batch, sequence length
    D = 14                    # input_size (module default)
    H = 32                    # hidden_size (small; 4H = 128 = one vreg lane width)
    E = 8                     # num_experts

    key = jax.random.PRNGKey(0)
    ks = jax.random.split(key, 7)
    k_bound = 1.0 / (H ** 0.5)  # PyTorch LSTM/Linear uniform init bound

    x = jax.random.normal(ks[0], (B, T, D), dtype=jnp.float32)
    w_ih = jax.random.uniform(ks[1], (4 * H, D), minval=-k_bound, maxval=k_bound, dtype=jnp.float32)
    w_hh = jax.random.uniform(ks[2], (4 * H, H), minval=-k_bound, maxval=k_bound, dtype=jnp.float32)
    b_ih = jax.random.uniform(ks[3], (4 * H,), minval=-k_bound, maxval=k_bound, dtype=jnp.float32)
    b_hh = jax.random.uniform(ks[4], (4 * H,), minval=-k_bound, maxval=k_bound, dtype=jnp.float32)
    w_fc = jax.random.uniform(ks[5], (E, H), minval=-k_bound, maxval=k_bound, dtype=jnp.float32)
    b_fc = jax.random.uniform(ks[6], (E,), minval=-k_bound, maxval=k_bound, dtype=jnp.float32)

    ref = gating_reference(x, w_ih, w_hh, b_ih, b_hh, w_fc, b_fc)

    # 1) f32 MXU operands, gridless (v5e/v6e single-TensorCore path).
    params = prepare_gating_params(w_ih, w_hh, b_ih, b_hh, w_fc, b_fc)
    out = jax.block_until_ready(gating_forward(x, params))
    assert out.shape == (B, E)
    assert jnp.allclose(out, ref, atol=1e-3, rtol=1e-3), "f32 mismatch vs reference"
    assert jnp.allclose(jnp.sum(out, axis=1), 1.0, atol=1e-4), "softmax rows must sum to 1"

    # 2) Batch-tiled "parallel" grid (v7x dual-TensorCore path) — same math.
    out_tiled = jax.block_until_ready(gating_forward(x, params, batch_tile=8))
    assert jnp.allclose(out_tiled, ref, atol=1e-3, rtol=1e-3), "tiled mismatch vs reference"

    # 3) bf16 MXU operands (recommended on v6e/v7x), f32 accumulation/state.
    params_bf16 = prepare_gating_params(w_ih, w_hh, b_ih, b_hh, w_fc, b_fc,
                                        use_bf16_matmul=True)
    out_bf16 = jax.block_until_ready(gating_forward(x, params_bf16))
    assert jnp.allclose(out_bf16, ref, atol=3e-2, rtol=3e-2), "bf16 mismatch vs reference"
    assert jnp.allclose(jnp.sum(out_bf16, axis=1), 1.0, atol=1e-4), "bf16 softmax rows must sum to 1"

    print("KERNEL_OK")
</pallas_src>

<mosaic_0001>
module attributes {stable_mosaic.version = 11 : i64} {
  func.func @_gating_kernel(%arg0: memref<6x16x16xf32, #tpu.memory_space<vmem>>, %arg1: memref<16x128xf32, #tpu.memory_space<vmem>>, %arg2: memref<32x128xf32, #tpu.memory_space<vmem>>, %arg3: memref<1x128xf32, #tpu.memory_space<vmem>>, %arg4: memref<32x8xf32, #tpu.memory_space<vmem>>, %arg5: memref<1x8xf32, #tpu.memory_space<vmem>>, %arg6: memref<16x8xf32, #tpu.memory_space<vmem>>) attributes {dimension_semantics = [], scalar_prefetch = 0 : i64, scratch_operands = 0 : i64, tpu.core_type = #tpu.core_type<tc>} {
    %c0 = arith.constant 0 : index
    %c0_0 = arith.constant 0 : index
    %c0_1 = arith.constant 0 : index
    %0 = vector.load %arg0[%c0, %c0_0, %c0_1] : memref<6x16x16xf32, #tpu.memory_space<vmem>>, vector<6x16x16xf32>
    %1 = vector.shape_cast %0 : vector<6x16x16xf32> to vector<96x16xf32>
    %c0_2 = arith.constant 0 : index
    %c0_3 = arith.constant 0 : index
    %2 = vector.load %arg1[%c0_2, %c0_3] : memref<16x128xf32, #tpu.memory_space<vmem>>, vector<16x128xf32>
    %cst = arith.constant dense<0.000000e+00> : vector<96x128xf32>
    %3 = tpu.matmul %1, %2, %cst {dimension_numbers = #tpu.dot_dimension_numbers<[1], [0], [0], [1], [0, 0, 1, 1], [], []>} : vector<96x16xf32>, vector<16x128xf32>, vector<96x128xf32> -> vector<96x128xf32>
    %c0_4 = arith.constant 0 : index
    %c0_5 = arith.constant 0 : index
    %4 = vector.load %arg3[%c0_4, %c0_5] : memref<1x128xf32, #tpu.memory_space<vmem>>, vector<1x128xf32>
    %5 = vector.broadcast %4 : vector<1x128xf32> to vector<96x128xf32>
    %6 = arith.addf %3, %5 : vector<96x128xf32>
    %c0_6 = arith.constant 0 : index
    %c0_7 = arith.constant 0 : index
    %7 = vector.load %arg2[%c0_6, %c0_7] : memref<32x128xf32, #tpu.memory_space<vmem>>, vector<32x128xf32>
    %cst_8 = arith.constant 0.000000e+00 : f32
    %8 = vector.broadcast %cst_8 : f32 to vector<16x32xf32>
    %cst_9 = arith.constant 0.000000e+00 : f32
    %9 = vector.broadcast %cst_9 : f32 to vector<16x32xf32>
    %10 = vector.extract_strided_slice %6 {offsets = [0, 0], sizes = [16, 128], strides = [1, 1]} : vector<96x128xf32> to vector<16x128xf32>
    %cst_10 = arith.constant dense<0.000000e+00> : vector<16x128xf32>
    %11 = tpu.matmul %8, %7, %cst_10 {dimension_numbers = #tpu.dot_dimension_numbers<[1], [0], [0], [1], [0, 0, 1, 1], [], []>} : vector<16x32xf32>, vector<32x128xf32>, vector<16x128xf32> -> vector<16x128xf32>
    %12 = arith.addf %10, %11 : vector<16x128xf32>
    %13 = arith.negf %12 : vector<16x128xf32>
    %14 = math.exp %13 : vector<16x128xf32>
    %cst_11 = arith.constant 1.000000e+00 : f32
    %15 = vector.broadcast %cst_11 : f32 to vector<16x128xf32>
    %16 = arith.addf %15, %14 : vector<16x128xf32>
    %17 = arith.divf %15, %16 : vector<16x128xf32>
    %18 = vector.extract_strided_slice %17 {offsets = [0, 0], sizes = [16, 32], strides = [1, 1]} : vector<16x128xf32> to vector<16x32xf32>
    %19 = vector.extract_strided_slice %17 {offsets = [0, 32], sizes = [16, 32], strides = [1, 1]} : vector<16x128xf32> to vector<16x32xf32>
    %20 = vector.extract_strided_slice %17 {offsets = [0, 64], sizes = [16, 32], strides = [1, 1]} : vector<16x128xf32> to vector<16x32xf32>
    %21 = vector.extract_strided_slice %17 {offsets = [0, 96], sizes = [16, 32], strides = [1, 1]} : vector<16x128xf32> to vector<16x32xf32>
    %cst_12 = arith.constant 2.000000e+00 : f32
    %22 = vector.broadcast %cst_12 : f32 to vector<16x32xf32>
    %23 = arith.mulf %22, %21 : vector<16x32xf32>
    %cst_13 = arith.constant 1.000000e+00 : f32
    %24 = vector.broadcast %cst_13 : f32 to vector<16x32xf32>
    %25 = arith.subf %23, %24 : vector<16x32xf32>
    %26 = arith.mulf %19, %9 : vector<16x32xf32>
    %27 = arith.mulf %18, %25 : vector<16x32xf32>
    %28 = arith.addf %26, %27 : vector<16x32xf32>
    %29 = math.tanh %28 : vector<16x32xf32>
    %30 = arith.mulf %20, %29 : vector<16x32xf32>
    %31 = vector.extract_strided_slice %6 {offsets = [16, 0], sizes = [16, 128], strides = [1, 1]} : vector<96x128xf32> to vector<16x128xf32>
    %cst_14 = arith.constant dense<0.000000e+00> : vector<16x128xf32>
    %32 = tpu.matmul %30, %7, %cst_14 {dimension_numbers = #tpu.dot_dimension_numbers<[1], [0], [0], [1], [0, 0, 1, 1], [], []>} : vector<16x32xf32>, vector<32x128xf32>, vector<16x128xf32> -> vector<16x128xf32>
    %33 = arith.addf %31, %32 : vector<16x128xf32>
    %34 = arith.negf %33 : vector<16x128xf32>
    %35 = math.exp %34 : vector<16x128xf32>
    %cst_15 = arith.constant 1.000000e+00 : f32
    %36 = vector.broadcast %cst_15 : f32 to vector<16x128xf32>
    %37 = arith.addf %36, %35 : vector<16x128xf32>
    %38 = arith.divf %36, %37 : vector<16x128xf32>
    %39 = vector.extract_strided_slice %38 {offsets = [0, 0], sizes = [16, 32], strides = [1, 1]} : vector<16x128xf32> to vector<16x32xf32>
    %40 = vector.extract_strided_slice %38 {offsets = [0, 32], sizes = [16, 32], strides = [1, 1]} : vector<16x128xf32> to vector<16x32xf32>
    %41 = vector.extract_strided_slice %38 {offsets = [0, 64], sizes = [16, 32], strides = [1, 1]} : vector<16x128xf32> to vector<16x32xf32>
    %42 = vector.extract_strided_slice %38 {offsets = [0, 96], sizes = [16, 32], strides = [1, 1]} : vector<16x128xf32> to vector<16x32xf32>
    %cst_16 = arith.constant 2.000000e+00 : f32
    %43 = vector.broadcast %cst_16 : f32 to vector<16x32xf32>
    %44 = arith.mulf %43, %42 : vector<16x32xf32>
    %cst_17 = arith.constant 1.000000e+00 : f32
    %45 = vector.broadcast %cst_17 : f32 to vector<16x32xf32>
    %46 = arith.subf %44, %45 : vector<16x32xf32>
    %47 = arith.mulf %40, %28 : vector<16x32xf32>
    %48 = arith.mulf %39, %46 : vector<16x32xf32>
    %49 = arith.addf %47, %48 : vector<16x32xf32>
    %50 = math.tanh %49 : vector<16x32xf32>
    %51 = arith.mulf %41, %50 : vector<16x32xf32>
    %52 = vector.extract_strided_slice %6 {offsets = [32, 0], sizes = [16, 128], strides = [1, 1]} : vector<96x128xf32> to vector<16x128xf32>
    %cst_18 = arith.constant dense<0.000000e+00> : vector<16x128xf32>
    %53 = tpu.matmul %51, %7, %cst_18 {dimension_numbers = #tpu.dot_dimension_numbers<[1], [0], [0], [1], [0, 0, 1, 1], [], []>} : vector<16x32xf32>, vector<32x128xf32>, vector<16x128xf32> -> vector<16x128xf32>
    %54 = arith.addf %52, %53 : vector<16x128xf32>
    %55 = arith.negf %54 : vector<16x128xf32>
    %56 = math.exp %55 : vector<16x128xf32>
    %cst_19 = arith.constant 1.000000e+00 : f32
    %57 = vector.broadcast %cst_19 : f32 to vector<16x128xf32>
    %58 = arith.addf %57, %56 : vector<16x128xf32>
    %59 = arith.divf %57, %58 : vector<16x128xf32>
    %60 = vector.extract_strided_slice %59 {offsets = [0, 0], sizes = [16, 32], strides = [1, 1]} : vector<16x128xf32> to vector<16x32xf32>
    %61 = vector.extract_strided_slice %59 {offsets = [0, 32], sizes = [16, 32], strides = [1, 1]} : vector<16x128xf32> to vector<16x32xf32>
    %62 = vector.extract_strided_slice %59 {offsets = [0, 64], sizes = [16, 32], strides = [1, 1]} : vector<16x128xf32> to vector<16x32xf32>
    %63 = vector.extract_strided_slice %59 {offsets = [0, 96], sizes = [16, 32], strides = [1, 1]} : vector<16x128xf32> to vector<16x32xf32>
    %cst_20 = arith.constant 2.000000e+00 : f32
    %64 = vector.broadcast %cst_20 : f32 to vector<16x32xf32>
    %65 = arith.mulf %64, %63 : vector<16x32xf32>
    %cst_21 = arith.constant 1.000000e+00 : f32
    %66 = vector.broadcast %cst_21 : f32 to vector<16x32xf32>
    %67 = arith.subf %65, %66 : vector<16x32xf32>
    %68 = arith.mulf %61, %49 : vector<16x32xf32>
    %69 = arith.mulf %60, %67 : vector<16x32xf32>
    %70 = arith.addf %68, %69 : vector<16x32xf32>
    %71 = math.tanh %70 : vector<16x32xf32>
    %72 = arith.mulf %62, %71 : vector<16x32xf32>
    %73 = vector.extract_strided_slice %6 {offsets = [48, 0], sizes = [16, 128], strides = [1, 1]} : vector<96x128xf32> to vector<16x128xf32>
    %cst_22 = arith.constant dense<0.000000e+00> : vector<16x128xf32>
    %74 = tpu.matmul %72, %7, %cst_22 {dimension_numbers = #tpu.dot_dimension_numbers<[1], [0], [0], [1], [0, 0, 1, 1], [], []>} : vector<16x32xf32>, vector<32x128xf32>, vector<16x128xf32> -> vector<16x128xf32>
    %75 = arith.addf %73, %74 : vector<16x128xf32>
    %76 = arith.negf %75 : vector<16x128xf32>
    %77 = math.exp %76 : vector<16x128xf32>
    %cst_23 = arith.constant 1.000000e+00 : f32
    %78 = vector.broadcast %cst_23 : f32 to vector<16x128xf32>
    %79 = arith.addf %78, %77 : vector<16x128xf32>
    %80 = arith.divf %78, %79 : vector<16x128xf32>
    %81 = vector.extract_strided_slice %80 {offsets = [0, 0], sizes = [16, 32], strides = [1, 1]} : vector<16x128xf32> to vector<16x32xf32>
    %82 = vector.extract_strided_slice %80 {offsets = [0, 32], sizes = [16, 32], strides = [1, 1]} : vector<16x128xf32> to vector<16x32xf32>
    %83 = vector.extract_strided_slice %80 {offsets = [0, 64], sizes = [16, 32], strides = [1, 1]} : vector<16x128xf32> to vector<16x32xf32>
    %84 = vector.extract_strided_slice %80 {offsets = [0, 96], sizes = [16, 32], strides = [1, 1]} : vector<16x128xf32> to vector<16x32xf32>
    %cst_24 = arith.constant 2.000000e+00 : f32
    %85 = vector.broadcast %cst_24 : f32 to vector<16x32xf32>
    %86 = arith.mulf %85, %84 : vector<16x32xf32>
    %cst_25 = arith.constant 1.000000e+00 : f32
    %87 = vector.broadcast %cst_25 : f32 to vector<16x32xf32>
    %88 = arith.subf %86, %87 : vector<16x32xf32>
    %89 = arith.mulf %82, %70 : vector<16x32xf32>
    %90 = arith.mulf %81, %88 : vector<16x32xf32>
    %91 = arith.addf %89, %90 : vector<16x32xf32>
    %92 = math.tanh %91 : vector<16x32xf32>
    %93 = arith.mulf %83, %92 : vector<16x32xf32>
    %94 = vector.extract_strided_slice %6 {offsets = [64, 0], sizes = [16, 128], strides = [1, 1]} : vector<96x128xf32> to vector<16x128xf32>
    %cst_26 = arith.constant dense<0.000000e+00> : vector<16x128xf32>
    %95 = tpu.matmul %93, %7, %cst_26 {dimension_numbers = #tpu.dot_dimension_numbers<[1], [0], [0], [1], [0, 0, 1, 1], [], []>} : vector<16x32xf32>, vector<32x128xf32>, vector<16x128xf32> -> vector<16x128xf32>
    %96 = arith.addf %94, %95 : vector<16x128xf32>
    %97 = arith.negf %96 : vector<16x128xf32>
    %98 = math.exp %97 : vector<16x128xf32>
    %cst_27 = arith.constant 1.000000e+00 : f32
    %99 = vector.broadcast %cst_27 : f32 to vector<16x128xf32>
    %100 = arith.addf %99, %98 : vector<16x128xf32>
    %101 = arith.divf %99, %100 : vector<16x128xf32>
    %102 = vector.extract_strided_slice %101 {offsets = [0, 0], sizes = [16, 32], strides = [1, 1]} : vector<16x128xf32> to vector<16x32xf32>
    %103 = vector.extract_strided_slice %101 {offsets = [0, 32], sizes = [16, 32], strides = [1, 1]} : vector<16x128xf32> to vector<16x32xf32>
    %104 = vector.extract_strided_slice %101 {offsets = [0, 64], sizes = [16, 32], strides = [1, 1]} : vector<16x128xf32> to vector<16x32xf32>
    %105 = vector.extract_strided_slice %101 {offsets = [0, 96], sizes = [16, 32], strides = [1, 1]} : vector<16x128xf32> to vector<16x32xf32>
    %cst_28 = arith.constant 2.000000e+00 : f32
    %106 = vector.broadcast %cst_28 : f32 to vector<16x32xf32>
    %107 = arith.mulf %106, %105 : vector<16x32xf32>
    %cst_29 = arith.constant 1.000000e+00 : f32
    %108 = vector.broadcast %cst_29 : f32 to vector<16x32xf32>
    %109 = arith.subf %107, %108 : vector<16x32xf32>
    %110 = arith.mulf %103, %91 : vector<16x32xf32>
    %111 = arith.mulf %102, %109 : vector<16x32xf32>
    %112 = arith.addf %110, %111 : vector<16x32xf32>
    %113 = math.tanh %112 : vector<16x32xf32>
    %114 = arith.mulf %104, %113 : vector<16x32xf32>
    %115 = vector.extract_strided_slice %6 {offsets = [80, 0], sizes = [16, 128], strides = [1, 1]} : vector<96x128xf32> to vector<16x128xf32>
    %cst_30 = arith.constant dense<0.000000e+00> : vector<16x128xf32>
    %116 = tpu.matmul %114, %7, %cst_30 {dimension_numbers = #tpu.dot_dimension_numbers<[1], [0], [0], [1], [0, 0, 1, 1], [], []>} : vector<16x32xf32>, vector<32x128xf32>, vector<16x128xf32> -> vector<16x128xf32>
    %117 = arith.addf %115, %116 : vector<16x128xf32>
    %118 = arith.negf %117 : vector<16x128xf32>
    %119 = math.exp %118 : vector<16x128xf32>
    %cst_31 = arith.constant 1.000000e+00 : f32
    %120 = vector.broadcast %cst_31 : f32 to vector<16x128xf32>
    %121 = arith.addf %120, %119 : vector<16x128xf32>
    %122 = arith.divf %120, %121 : vector<16x128xf32>
    %123 = vector.extract_strided_slice %122 {offsets = [0, 0], sizes = [16, 32], strides = [1, 1]} : vector<16x128xf32> to vector<16x32xf32>
    %124 = vector.extract_strided_slice %122 {offsets = [0, 32], sizes = [16, 32], strides = [1, 1]} : vector<16x128xf32> to vector<16x32xf32>
    %125 = vector.extract_strided_slice %122 {offsets = [0, 64], sizes = [16, 32], strides = [1, 1]} : vector<16x128xf32> to vector<16x32xf32>
    %126 = vector.extract_strided_slice %122 {offsets = [0, 96], sizes = [16, 32], strides = [1, 1]} : vector<16x128xf32> to vector<16x32xf32>
    %cst_32 = arith.constant 2.000000e+00 : f32
    %127 = vector.broadcast %cst_32 : f32 to vector<16x32xf32>
    %128 = arith.mulf %127, %126 : vector<16x32xf32>
    %cst_33 = arith.constant 1.000000e+00 : f32
    %129 = vector.broadcast %cst_33 : f32 to vector<16x32xf32>
    %130 = arith.subf %128, %129 : vector<16x32xf32>
    %131 = arith.mulf %124, %112 : vector<16x32xf32>
    %132 = arith.mulf %123, %130 : vector<16x32xf32>
    %133 = arith.addf %131, %132 : vector<16x32xf32>
    %134 = math.tanh %133 : vector<16x32xf32>
    %135 = arith.mulf %125, %134 : vector<16x32xf32>
    %c0_34 = arith.constant 0 : index
    %c0_35 = arith.constant 0 : index
    %136 = vector.load %arg4[%c0_34, %c0_35] : memref<32x8xf32, #tpu.memory_space<vmem>>, vector<32x8xf32>
    %cst_36 = arith.constant dense<0.000000e+00> : vector<16x8xf32>
    %137 = tpu.matmul %135, %136, %cst_36 {dimension_numbers = #tpu.dot_dimension_numbers<[1], [0], [0], [1], [0, 0, 1, 1], [], []>} : vector<16x32xf32>, vector<32x8xf32>, vector<16x8xf32> -> vector<16x8xf32>
    %c0_37 = arith.constant 0 : index
    %c0_38 = arith.constant 0 : index
    %138 = vector.load %arg5[%c0_37, %c0_38] : memref<1x8xf32, #tpu.memory_space<vmem>>, vector<1x8xf32>
    %139 = vector.broadcast %138 : vector<1x8xf32> to vector<16x8xf32>
    %140 = arith.addf %137, %139 : vector<16x8xf32>
    %cst_39 = arith.constant dense<0xFF800000> : vector<16xf32>
    %141 = vector.multi_reduction <maximumf>, %140, %cst_39 [1] : vector<16x8xf32> to vector<16xf32>
    %142 = vector.shape_cast %141 : vector<16xf32> to vector<16x1xf32>
    %143 = vector.broadcast %142 : vector<16x1xf32> to vector<16x8xf32>
    %144 = arith.subf %140, %143 : vector<16x8xf32>
    %145 = math.exp %144 : vector<16x8xf32>
    %cst_40 = arith.constant dense<0.000000e+00> : vector<16xf32>
    %146 = vector.multi_reduction <add>, %145, %cst_40 [1] : vector<16x8xf32> to vector<16xf32>
    %147 = vector.shape_cast %146 : vector<16xf32> to vector<16x1xf32>
    %148 = vector.broadcast %147 : vector<16x1xf32> to vector<16x8xf32>
    %149 = arith.divf %145, %148 : vector<16x8xf32>
    %c0_41 = arith.constant 0 : index
    %c0_42 = arith.constant 0 : index
    %150 = vector.load %arg6[%c0_41, %c0_42] : memref<16x8xf32, #tpu.memory_space<vmem>>, vector<16x8xf32>
    tpu.vector_store %arg6[%c0_41, %c0_42], %149 {strides = array<i32>} : memref<16x8xf32, #tpu.memory_space<vmem>>, vector<16x8xf32>,
    return
  }
}

</mosaic_0001>

<llo_original>
// kernel: tpu_custom_call.1
$region0: #{tpu_custom_call.1}
  #allocation0 [shape = 'u32[]', space=smem, size = 0x4, offset = 0x4, fixed_abs, tag = 'smem constant byte address 0x4 - core index']
  #allocation1 [shape = 'u32[144,128]{1,0:T(1,128)}', space=vmem, size = 0x12000, scoped, tag = 'internal scratch']
  %s0 = inlined_call_operand.hbm [shape: f32[6,16,16], index: 0, kind: input, shape index: {}]
  %s1 = inlined_call_operand.hbm [shape: f32[16,128], index: 1, kind: input, shape index: {}]
  %s2 = inlined_call_operand.vmem [shape: f32[32,128], index: 2, kind: input, shape index: {}]
  %s3 = inlined_call_operand.vmem [shape: f32[1,128], index: 3, kind: input, shape index: {}]
  %s4 = inlined_call_operand.vmem [shape: f32[32,8], index: 4, kind: input, shape index: {}]
  %s5 = inlined_call_operand.vmem [shape: f32[1,8], index: 5, kind: input, shape index: {}]
  %s6 = inlined_call_operand.vmem [shape: f32[16,8], index: 6, kind: output, shape index: {}]
  %s7 = sld [smem:[#allocation0]]
  $region42: #{tpu_custom_call.1} parent=0
    _
  %s9 = ssub.s32 1, %s7
  %s10 = scalar_select 0, %s9, %s7
  $region1: #{tpu_custom_call.1} parent=0
    #allocation2 [shape = 'u8[49152]{0}', space=vmem, size = 0xc000, scoped, tag = 'input window, operand 0, single buffered']
    #allocation3 [shape = 's32[1]{0}', space=sflag, size = 0x4, scoped, tag = 'scoped memory for tpu_custom_call.1']
    #allocation4 [shape = 'u8[8192]{0}', space=vmem, size = 0x2000, scoped, tag = 'input window, operand 1, single buffered']
    #allocation5 [shape = 's32[1]{0}', space=sflag, size = 0x4, scoped, tag = 'scoped memory for tpu_custom_call.1']
    %11 = vsyncpa [#allocation3], 0
    %12 = vsyncpa [#allocation5], 0
    // Predicated region
    $region2: #{tpu_custom_call.1} parent=1 // pred_check
      _
    $region3: #{tpu_custom_call.1} parent=1 // pred_check_branch
      %14 = sbr.rel (0) target = $region5
    $region4: #{tpu_custom_call.1} parent=1 // pred_region
      %s16 = ssub.s32 1536, 1536
      %17 = vsyncadd [#allocation3], %s16
      %s18 = sshll.u32 [#allocation2], 4
      %s19 = int_to_ptr.vmem [resolvable:$true] %s18
      %24 = dma.hbm_to_vmem [thread:$0]  %s0, 1536, %s19, [#allocation3], 128, 128, 8
    $region5: #{tpu_custom_call.1} parent=1 // pred_fallthru
      _
    // Predicated region
    $region6: #{tpu_custom_call.1} parent=1 // pred_check
      _
    $region7: #{tpu_custom_call.1} parent=1 // pred_check_branch
      %26 = sbr.rel (0) target = $region9
    $region8: #{tpu_custom_call.1} parent=1 // pred_region
      %s28 = ssub.s32 256, 256
      %29 = vsyncadd [#allocation5], %s28
      %s30 = sshll.u32 [#allocation4], 4
      %s31 = int_to_ptr.vmem [resolvable:$true] %s30
      %36 = dma.hbm_to_vmem [thread:$0]  %s1, 256, %s31, [#allocation5], 128, 128, 8
    $region9: #{tpu_custom_call.1} parent=1 // pred_fallthru
      _
    // Predicated region
    $region10: #{tpu_custom_call.1} parent=1 // pred_check
      _
    $region11: #{tpu_custom_call.1} parent=1 // pred_check_branch
      %38 = sbr.rel (0) target = $region13
    $region12: #{tpu_custom_call.1} parent=1 // pred_region
      _
    $region13: #{tpu_custom_call.1} parent=1 // pred_fallthru
      _
    // Predicated region
    $region14: #{tpu_custom_call.1} parent=1 // pred_check
      _
    $region15: #{tpu_custom_call.1} parent=1 // pred_check_branch
      %40 = sbr.rel (0) target = $region17
    $region16: #{tpu_custom_call.1} parent=1 // pred_region
      _
    $region17: #{tpu_custom_call.1} parent=1 // pred_fallthru
      _
    // Predicated region
    $region18: #{tpu_custom_call.1} parent=1 // pred_check
      _
    $region19: #{tpu_custom_call.1} parent=1 // pred_check_branch
      %42 = sbr.rel (0) target = $region21
    $region20: #{tpu_custom_call.1} parent=1 // pred_region
      _
    $region21: #{tpu_custom_call.1} parent=1 // pred_fallthru
      _
    // Predicated region
    $region22: #{tpu_custom_call.1} parent=1 // pred_check
      _
    $region23: #{tpu_custom_call.1} parent=1 // pred_check_branch
      %44 = sbr.rel (0) target = $region25
    $region24: #{tpu_custom_call.1} parent=1 // pred_region
      _
    $region25: #{tpu_custom_call.1} parent=1 // pred_fallthru
      _
    // Predicated region
    $region26: #{tpu_custom_call.1} parent=1 // pred_check
      _
    $region27: #{tpu_custom_call.1} parent=1 // pred_check_branch
      %46 = sbr.rel (0) target = $region29
    $region28: #{tpu_custom_call.1} parent=1 // pred_region
      %47 = dma.done [#allocation3], 1536
    $region29: #{tpu_custom_call.1} parent=1 // pred_fallthru
      _
    // Predicated region
    $region30: #{tpu_custom_call.1} parent=1 // pred_check
      _
    $region31: #{tpu_custom_call.1} parent=1 // pred_check_branch
      %49 = sbr.rel (0) target = $region33
    $region32: #{tpu_custom_call.1} parent=1 // pred_region
      %50 = dma.done [#allocation5], 256
    $region33: #{tpu_custom_call.1} parent=1 // pred_fallthru
      _
    %v51 = vld [vmem:[#allocation2] sm:$0xff]
    %v52 = vld [vmem:[#allocation2 + $0x8] sm:$0xff]
    %v53 = vld [vmem:[#allocation2 + $0x10] sm:$0xff]
    %v54 = vld [vmem:[#allocation2 + $0x18] sm:$0xff]
    %v55 = vld [vmem:[#allocation2 + $0x20] sm:$0xff]
    %v56 = vld [vmem:[#allocation2 + $0x28] sm:$0xff]
    %v57 = vld [vmem:[#allocation2 + $0x30] sm:$0xff]
    %v58 = vld [vmem:[#allocation2 + $0x38] sm:$0xff]
    %v59 = vld [vmem:[#allocation2 + $0x40] sm:$0xff]
    %v60 = vld [vmem:[#allocation2 + $0x48] sm:$0xff]
    %v61 = vld [vmem:[#allocation2 + $0x50] sm:$0xff]
    %v62 = vld [vmem:[#allocation2 + $0x58] sm:$0xff]
    %v63 = vld [vmem:[#allocation4] sm:$0xff]
    %v64 = vld [vmem:[#allocation4 + $0x8] sm:$0xff]
    %v65 = vld [vmem:[%s3] sm:$0x1]
    %v67 = vlaneseq
    %v68 = vshrl.u32 %v67, 7
    %v69 = vsub.s32 0, %v68
    %v70 = vrot.slane %v65, %v69
    %vm72 = vcmask 130048
    %v74 = vsel %vm72, %v51, 0
    %v77 = vsel %vm72, %v52, 0
    %v80 = vsel %vm72, %v53, 0
    %v83 = vsel %vm72, %v54, 0
    %v86 = vsel %vm72, %v55, 0
    %v89 = vsel %vm72, %v56, 0
    %v92 = vsel %vm72, %v57, 0
    %v95 = vsel %vm72, %v58, 0
    %v98 = vsel %vm72, %v59, 0
    %v101 = vsel %vm72, %v60, 0
    %v104 = vsel %vm72, %v61, 0
    %v107 = vsel %vm72, %v62, 0
    %109 = vmatprep.subr.mxu0 0.0
    %110 = vmatpush1.msra.mxu0 0.0
    %111 = vmatprep.subr.mxu0 0.0
    %112 = vmatpush1.msra.mxu0 0.0
    %113 = vmatprep.subr.mxu0 0.0
    %114 = vmatpush1.msra.mxu0 0.0
    %115 = vmatprep.subr.mxu0 0.0
    %116 = vmatpush1.msra.mxu0 0.0
    %117 = vmatprep.subr.mxu0 0.0
    %118 = vmatpush1.msra.mxu0 0.0
    %119 = vmatprep.subr.mxu0 0.0
    %120 = vmatpush1.msra.mxu0 0.0
    %121 = vmatprep.subr.mxu0 0.0
    %122 = vmatpush1.msra.mxu0 0.0
    %123 = vmatprep.subr.mxu0 0.0
    %124 = vmatpush1.msra.mxu0 0.0
    %125 = vmatprep.subr.mxu0 0.0
    %126 = vmatpush1.msra.mxu0 0.0
    %127 = vmatprep.subr.mxu0 0.0
    %128 = vmatpush1.msra.mxu0 0.0
    %129 = vmatprep.subr.mxu0 0.0
    %130 = vmatpush1.msra.mxu0 0.0
    %131 = vmatprep.subr.mxu0 0.0
    %132 = vmatpush1.msra.mxu0 0.0
    %133 = vmatprep.subr.mxu0 0.0
    %134 = vmatpush1.msra.mxu0 0.0
    %135 = vmatprep.subr.mxu0 0.0
    %136 = vmatpush1.msra.mxu0 0.0
    %137 = vmatprep.subr.mxu0 0.0
    %138 = vmatpush1.msra.mxu0 %v64
    %139 = vmatprep.subr.mxu0 0.0
    %140 = vmatpush1.msra.mxu0 %v63
    %141 = vmatprep.subr.mxu0 0.0
    %142 = vmatpush2.msra.mxu0 0.0
    %143 = vmatprep.subr.mxu0 0.0
    %144 = vmatpush2.msra.mxu0 0.0
    %145 = vmatprep.subr.mxu0 0.0
    %146 = vmatpush2.msra.mxu0 0.0
    %147 = vmatprep.subr.mxu0 0.0
    %148 = vmatpush2.msra.mxu0 0.0
    %149 = vmatprep.subr.mxu0 0.0
    %150 = vmatpush2.msra.mxu0 0.0
    %151 = vmatprep.subr.mxu0 0.0
    %152 = vmatpush2.msra.mxu0 0.0
    %153 = vmatprep.subr.mxu0 0.0
    %154 = vmatpush2.msra.mxu0 0.0
    %155 = vmatprep.subr.mxu0 0.0
    %156 = vmatpush2.msra.mxu0 0.0
    %157 = vmatprep.subr.mxu0 0.0
    %158 = vmatpush2.msra.mxu0 0.0
    %159 = vmatprep.subr.mxu0 0.0
    %160 = vmatpush2.msra.mxu0 0.0
    %161 = vmatprep.subr.mxu0 0.0
    %162 = vmatpush2.msra.mxu0 0.0
    %163 = vmatprep.subr.mxu0 0.0
    %164 = vmatpush2.msra.mxu0 0.0
    %165 = vmatprep.subr.mxu0 0.0
    %166 = vmatpush2.msra.mxu0 0.0
    %167 = vmatprep.subr.mxu0 0.0
    %168 = vmatpush2.msra.mxu0 0.0
    %169 = vmatprep.subr.mxu0 0.0
    %170 = vmatpush2.msra.mxu0 0.0
    %171 = vmatprep.subr.mxu0 0.0
    %172 = vmatpush2.msra.mxu0 0.0
    %173 = vmatprep.mubr.f32.mxu0 0.0
    %174 = vmatmul.mubr.f32.gmra.mxu0 %v74
    %v175 = vpop.f32.mrf.mxu0
    %v176 = vadd.f32 %v70, %v175
    %v177 = vpop.f32.mrf.mxu0
    %178 = vmatprep.mubr.f32.mxu0 0.0
    %179 = vmatmul.mubr.f32.gmra.mxu0 %v77
    %v180 = vpop.f32.mrf.mxu0
    %v181 = vadd.f32 %v70, %v180
    %v182 = vpop.f32.mrf.mxu0
    %183 = vmatprep.mubr.f32.mxu0 0.0
    %184 = vmatmul.mubr.f32.gmra.mxu0 %v80
    %v185 = vpop.f32.mrf.mxu0
    %v186 = vadd.f32 %v70, %v185
    %v187 = vpop.f32.mrf.mxu0
    %188 = vmatprep.mubr.f32.mxu0 0.0
    %189 = vmatmul.mubr.f32.gmra.mxu0 %v83
    %v190 = vpop.f32.mrf.mxu0
    %v191 = vadd.f32 %v70, %v190
    %v192 = vpop.f32.mrf.mxu0
    %193 = vmatprep.mubr.f32.mxu0 0.0
    %194 = vmatmul.mubr.f32.gmra.mxu0 %v86
    %v195 = vpop.f32.mrf.mxu0
    %v196 = vadd.f32 %v70, %v195
    %v197 = vpop.f32.mrf.mxu0
    %198 = vmatprep.mubr.f32.mxu0 0.0
    %199 = vmatmul.mubr.f32.gmra.mxu0 %v89
    %v200 = vpop.f32.mrf.mxu0
    %v201 = vadd.f32 %v70, %v200
    %v202 = vpop.f32.mrf.mxu0
    %203 = vmatprep.mubr.f32.mxu0 0.0
    %204 = vmatmul.mubr.f32.gmra.mxu0 %v92
    %v205 = vpop.f32.mrf.mxu0
    %v206 = vadd.f32 %v70, %v205
    %v207 = vpop.f32.mrf.mxu0
    %208 = vmatprep.mubr.f32.mxu0 0.0
    %209 = vmatmul.mubr.f32.gmra.mxu0 %v95
    %v210 = vpop.f32.mrf.mxu0
    %v211 = vadd.f32 %v70, %v210
    %v212 = vpop.f32.mrf.mxu0
    %213 = vmatprep.mubr.f32.mxu0 0.0
    %214 = vmatmul.mubr.f32.gmra.mxu0 %v98
    %v215 = vpop.f32.mrf.mxu0
    %v216 = vadd.f32 %v70, %v215
    %v217 = vpop.f32.mrf.mxu0
    %218 = vmatprep.mubr.f32.mxu0 0.0
    %219 = vmatmul.mubr.f32.gmra.mxu0 %v101
    %v220 = vpop.f32.mrf.mxu0
    %v221 = vadd.f32 %v70, %v220
    %v222 = vpop.f32.mrf.mxu0
    %223 = vmatprep.mubr.f32.mxu0 0.0
    %224 = vmatmul.mubr.f32.gmra.mxu0 %v104
    %v225 = vpop.f32.mrf.mxu0
    %v226 = vadd.f32 %v70, %v225
    %v227 = vpop.f32.mrf.mxu0
    %228 = vmatprep.mubr.f32.mxu0 0.0
    %229 = vmatmul.mubr.f32.gmra.mxu0 %v107
    %v230 = vpop.f32.mrf.mxu0
    %v231 = vadd.f32 %v70, %v230
    %v232 = vpop.f32.mrf.mxu0
    %233 = vdwg.mxu0
    %v234 = vld [vmem:[%s2] sm:$0xff]
    %v235 = vld [vmem:[%s2 + $0x8] sm:$0xff]
    %v236 = vld [vmem:[%s2 + $0x10] sm:$0xff]
    %v237 = vld [vmem:[%s2 + $0x18] sm:$0xff]
    %vm238 = vcmask 261120
    %v240 = vsel %vm238, 0.0, 0
    %242 = vmatprep.subr.mxu0 0.0
    %243 = vmatpush1.msra.mxu0 0.0
    %244 = vmatprep.subr.mxu0 0.0
    %245 = vmatpush1.msra.mxu0 0.0
    %246 = vmatprep.subr.mxu0 0.0
    %247 = vmatpush1.msra.mxu0 0.0
    %248 = vmatprep.subr.mxu0 0.0
    %249 = vmatpush1.msra.mxu0 0.0
    %250 = vmatprep.subr.mxu0 0.0
    %251 = vmatpush1.msra.mxu0 0.0
    %252 = vmatprep.subr.mxu0 0.0
    %253 = vmatpush1.msra.mxu0 0.0
    %254 = vmatprep.subr.mxu0 0.0
    %255 = vmatpush1.msra.mxu0 0.0
    %256 = vmatprep.subr.mxu0 0.0
    %257 = vmatpush1.msra.mxu0 0.0
    %258 = vmatprep.subr.mxu0 0.0
    %259 = vmatpush1.msra.mxu0 0.0
    %260 = vmatprep.subr.mxu0 0.0
    %261 = vmatpush1.msra.mxu0 0.0
    %262 = vmatprep.subr.mxu0 0.0
    %263 = vmatpush1.msra.mxu0 0.0
    %264 = vmatprep.subr.mxu0 0.0
    %265 = vmatpush1.msra.mxu0 0.0
    %266 = vmatprep.subr.mxu0 0.0
    %267 = vmatpush1.msra.mxu0 %v237
    %268 = vmatprep.subr.mxu0 0.0
    %269 = vmatpush1.msra.mxu0 %v236
    %270 = vmatprep.subr.mxu0 0.0
    %271 = vmatpush1.msra.mxu0 %v235
    %272 = vmatprep.subr.mxu0 0.0
    %273 = vmatpush1.msra.mxu0 %v234
    %274 = vmatprep.subr.mxu0 0.0
    %275 = vmatpush2.msra.mxu0 0.0
    %276 = vmatprep.subr.mxu0 0.0
    %277 = vmatpush2.msra.mxu0 0.0
    %278 = vmatprep.subr.mxu0 0.0
    %279 = vmatpush2.msra.mxu0 0.0
    %280 = vmatprep.subr.mxu0 0.0
    %281 = vmatpush2.msra.mxu0 0.0
    %282 = vmatprep.subr.mxu0 0.0
    %283 = vmatpush2.msra.mxu0 0.0
    %284 = vmatprep.subr.mxu0 0.0
    %285 = vmatpush2.msra.mxu0 0.0
    %286 = vmatprep.subr.mxu0 0.0
    %287 = vmatpush2.msra.mxu0 0.0
    %288 = vmatprep.subr.mxu0 0.0
    %289 = vmatpush2.msra.mxu0 0.0
    %290 = vmatprep.subr.mxu0 0.0
    %291 = vmatpush2.msra.mxu0 0.0
    %292 = vmatprep.subr.mxu0 0.0
    %293 = vmatpush2.msra.mxu0 0.0
    %294 = vmatprep.subr.mxu0 0.0
    %295 = vmatpush2.msra.mxu0 0.0
    %296 = vmatprep.subr.mxu0 0.0
    %297 = vmatpush2.msra.mxu0 0.0
    %298 = vmatprep.subr.mxu0 0.0
    %299 = vmatpush2.msra.mxu0 0.0
    %300 = vmatprep.subr.mxu0 0.0
    %301 = vmatpush2.msra.mxu0 0.0
    %302 = vmatprep.subr.mxu0 0.0
    %303 = vmatpush2.msra.mxu0 0.0
    %304 = vmatprep.subr.mxu0 0.0
    %305 = vmatpush2.msra.mxu0 0.0
    %306 = vmatprep.mubr.f32.mxu0 0.0
    %307 = vmatmul.mubr.f32.gmra.mxu0 %v240
    %v308 = vpop.f32.mrf.mxu0
    %v309 = vadd.f32 0.0, %v308
    %v310 = vpop.f32.mrf.mxu0
    %311 = vmatprep.mubr.f32.mxu0 0.0
    %312 = vmatmul.mubr.f32.gmra.mxu0 %v240
    %v313 = vpop.f32.mrf.mxu0
    %v314 = vadd.f32 0.0, %v313
    %v315 = vpop.f32.mrf.mxu0
    %316 = vdwg.mxu0
    %v317 = vadd.f32 %v176, %v309
    %v318 = vadd.f32 %v181, %v314
    %v319 = vxor.u32 %v317, 2147483648
    %v320 = vxor.u32 %v318, 2147483648
    %v321 = vmul.f32 %v319, 1.442695
    %v322 = vpow.pop %v321
    %v323 = vmul.f32 %v320, 1.442695
    %v324 = vpow.pop %v323
    %v325 = vadd.f32 %v322, 1.0
    %v326 = vadd.f32 %v324, 1.0
    %v327 = vrcp.pop %v325
    %v328 = vmul.f32 1.0, %v327
    %v329 = vrcp.pop %v326
    %v330 = vmul.f32 1.0, %v329
    %v331 = vmul.f32 %v328, 2.0
    %v332 = vmul.f32 %v330, 2.0
    %v333 = vsub.f32 %v331, 1.0
    %v334 = vsub.f32 %v332, 1.0
    %v335 = vmul.f32 %v328, 0.0
    %v336 = vmul.f32 %v330, 0.0
    %339 = vrot.lane.b32.xlu0 %v333, 32
    %v340 = vpop.permute.xlu0 %339
    %341 = vrot.lane.b32.xlu0 %v334, 32
    %v342 = vpop.permute.xlu0 %341
    %v345 = vmul.f32 %v328, %v340
    %v346 = vmul.f32 %v330, %v342
    %349 = vrot.lane.b32.xlu0 %v345, 32
    %v350 = vpop.permute.xlu0 %349
    %351 = vrot.lane.b32.xlu0 %v346, 32
    %v352 = vpop.permute.xlu0 %351
    %v355 = vadd.f32 %v335, %v350
    %v356 = vadd.f32 %v336, %v352
    %v357 = vtanh.pop %v355
    %v358 = vtanh.pop %v356
    %361 = vrot.lane.b32.xlu0 %v357, 32
    %v362 = vpop.permute.xlu0 %361
    %363 = vrot.lane.b32.xlu0 %v358, 32
    %v364 = vpop.permute.xlu0 %363
    %v367 = vmul.f32 %v328, %v362
    %v368 = vmul.f32 %v330, %v364
    %371 = vrot.lane.b32.xlu0 %v367, 64
    %v372 = vpop.permute.xlu0 %371
    %373 = vrot.lane.b32.xlu0 %v368, 64
    %v374 = vpop.permute.xlu0 %373
    %v375 = vsel %vm238, %v372, 0
    %v377 = vsel %vm238, %v374, 0
    %379 = vmatprep.subr.mxu0 0.0
    %380 = vmatpush1.msra.mxu0 0.0
    %381 = vmatprep.subr.mxu0 0.0
    %382 = vmatpush1.msra.mxu0 0.0
    %383 = vmatprep.subr.mxu0 0.0
    %384 = vmatpush1.msra.mxu0 0.0
    %385 = vmatprep.subr.mxu0 0.0
    %386 = vmatpush1.msra.mxu0 0.0
    %387 = vmatprep.subr.mxu0 0.0
    %388 = vmatpush1.msra.mxu0 0.0
    %389 = vmatprep.subr.mxu0 0.0
    %390 = vmatpush1.msra.mxu0 0.0
    %391 = vmatprep.subr.mxu0 0.0
    %392 = vmatpush1.msra.mxu0 0.0
    %393 = vmatprep.subr.mxu0 0.0
    %394 = vmatpush1.msra.mxu0 0.0
    %395 = vmatprep.subr.mxu0 0.0
    %396 = vmatpush1.msra.mxu0 0.0
    %397 = vmatprep.subr.mxu0 0.0
    %398 = vmatpush1.msra.mxu0 0.0
    %399 = vmatprep.subr.mxu0 0.0
    %400 = vmatpush1.msra.mxu0 0.0
    %401 = vmatprep.subr.mxu0 0.0
    %402 = vmatpush1.msra.mxu0 0.0
    %403 = vmatprep.subr.mxu0 0.0
    %404 = vmatpush1.msra.mxu0 %v237
    %405 = vmatprep.subr.mxu0 0.0
    %406 = vmatpush1.msra.mxu0 %v236
    %407 = vmatprep.subr.mxu0 0.0
    %408 = vmatpush1.msra.mxu0 %v235
    %409 = vmatprep.subr.mxu0 0.0
    %410 = vmatpush1.msra.mxu0 %v234
    %411 = vmatprep.subr.mxu0 0.0
    %412 = vmatpush2.msra.mxu0 0.0
    %413 = vmatprep.subr.mxu0 0.0
    %414 = vmatpush2.msra.mxu0 0.0
    %415 = vmatprep.subr.mxu0 0.0
    %416 = vmatpush2.msra.mxu0 0.0
    %417 = vmatprep.subr.mxu0 0.0
    %418 = vmatpush2.msra.mxu0 0.0
    %419 = vmatprep.subr.mxu0 0.0
    %420 = vmatpush2.msra.mxu0 0.0
    %421 = vmatprep.subr.mxu0 0.0
    %422 = vmatpush2.msra.mxu0 0.0
    %423 = vmatprep.subr.mxu0 0.0
    %424 = vmatpush2.msra.mxu0 0.0
    %425 = vmatprep.subr.mxu0 0.0
    %426 = vmatpush2.msra.mxu0 0.0
    %427 = vmatprep.subr.mxu0 0.0
    %428 = vmatpush2.msra.mxu0 0.0
    %429 = vmatprep.subr.mxu0 0.0
    %430 = vmatpush2.msra.mxu0 0.0
    %431 = vmatprep.subr.mxu0 0.0
    %432 = vmatpush2.msra.mxu0 0.0
    %433 = vmatprep.subr.mxu0 0.0
    %434 = vmatpush2.msra.mxu0 0.0
    %435 = vmatprep.subr.mxu0 0.0
    %436 = vmatpush2.msra.mxu0 0.0
    %437 = vmatprep.subr.mxu0 0.0
    %438 = vmatpush2.msra.mxu0 0.0
    %439 = vmatprep.subr.mxu0 0.0
    %440 = vmatpush2.msra.mxu0 0.0
    %441 = vmatprep.subr.mxu0 0.0
    %442 = vmatpush2.msra.mxu0 0.0
    %443 = vmatprep.mubr.f32.mxu0 0.0
    %444 = vmatmul.mubr.f32.gmra.mxu0 %v375
    %v445 = vpop.f32.mrf.mxu0
    %v446 = vadd.f32 0.0, %v445
    %v447 = vpop.f32.mrf.mxu0
    %448 = vmatprep.mubr.f32.mxu0 0.0
    %449 = vmatmul.mubr.f32.gmra.mxu0 %v377
    %v450 = vpop.f32.mrf.mxu0
    %v451 = vadd.f32 0.0, %v450
    %v452 = vpop.f32.mrf.mxu0
    %453 = vdwg.mxu0
    %v454 = vadd.f32 %v186, %v446
    %v455 = vadd.f32 %v191, %v451
    %v456 = vxor.u32 %v454, 2147483648
    %v457 = vxor.u32 %v455, 2147483648
    %v458 = vmul.f32 %v456, 1.442695
    %v459 = vpow.pop %v458
    %v460 = vmul.f32 %v457, 1.442695
    %v461 = vpow.pop %v460
    %v462 = vadd.f32 %v459, 1.0
    %v463 = vadd.f32 %v461, 1.0
    %v464 = vrcp.pop %v462
    %v465 = vmul.f32 1.0, %v464
    %v466 = vrcp.pop %v463
    %v467 = vmul.f32 1.0, %v466
    %v468 = vmul.f32 %v465, 2.0
    %v469 = vmul.f32 %v467, 2.0
    %v470 = vsub.f32 %v468, 1.0
    %v471 = vsub.f32 %v469, 1.0
    %v472 = vmul.f32 %v465, %v355
    %v473 = vmul.f32 %v467, %v356
    %476 = vrot.lane.b32.xlu0 %v470, 32
    %v477 = vpop.permute.xlu0 %476
    %478 = vrot.lane.b32.xlu0 %v471, 32
    %v479 = vpop.permute.xlu0 %478
    %v482 = vmul.f32 %v465, %v477
    %v483 = vmul.f32 %v467, %v479
    %486 = vrot.lane.b32.xlu0 %v482, 32
    %v487 = vpop.permute.xlu0 %486
    %488 = vrot.lane.b32.xlu0 %v483, 32
    %v489 = vpop.permute.xlu0 %488
    %v492 = vadd.f32 %v472, %v487
    %v493 = vadd.f32 %v473, %v489
    %v494 = vtanh.pop %v492
    %v495 = vtanh.pop %v493
    %498 = vrot.lane.b32.xlu0 %v494, 32
    %v499 = vpop.permute.xlu0 %498
    %500 = vrot.lane.b32.xlu0 %v495, 32
    %v501 = vpop.permute.xlu0 %500
    %v504 = vmul.f32 %v465, %v499
    %v505 = vmul.f32 %v467, %v501
    %508 = vrot.lane.b32.xlu0 %v504, 64
    %v509 = vpop.permute.xlu0 %508
    %510 = vrot.lane.b32.xlu0 %v505, 64
    %v511 = vpop.permute.xlu0 %510
    %v512 = vsel %vm238, %v509, 0
    %v514 = vsel %vm238, %v511, 0
    %516 = vmatprep.subr.mxu0 0.0
    %517 = vmatpush1.msra.mxu0 0.0
    %518 = vmatprep.subr.mxu0 0.0
    %519 = vmatpush1.msra.mxu0 0.0
    %520 = vmatprep.subr.mxu0 0.0
    %521 = vmatpush1.msra.mxu0 0.0
    %522 = vmatprep.subr.mxu0 0.0
    %523 = vmatpush1.msra.mxu0 0.0
    %524 = vmatprep.subr.mxu0 0.0
    %525 = vmatpush1.msra.mxu0 0.0
    %526 = vmatprep.subr.mxu0 0.0
    %527 = vmatpush1.msra.mxu0 0.0
    %528 = vmatprep.subr.mxu0 0.0
    %529 = vmatpush1.msra.mxu0 0.0
    %530 = vmatprep.subr.mxu0 0.0
    %531 = vmatpush1.msra.mxu0 0.0
    %532 = vmatprep.subr.mxu0 0.0
    %533 = vmatpush1.msra.mxu0 0.0
    %534 = vmatprep.subr.mxu0 0.0
    %535 = vmatpush1.msra.mxu0 0.0
    %536 = vmatprep.subr.mxu0 0.0
    %537 = vmatpush1.msra.mxu0 0.0
    %538 = vmatprep.subr.mxu0 0.0
    %539 = vmatpush1.msra.mxu0 0.0
    %540 = vmatprep.subr.mxu0 0.0
    %541 = vmatpush1.msra.mxu0 %v237
    %542 = vmatprep.subr.mxu0 0.0
    %543 = vmatpush1.msra.mxu0 %v236
    %544 = vmatprep.subr.mxu0 0.0
    %545 = vmatpush1.msra.mxu0 %v235
    %546 = vmatprep.subr.mxu0 0.0
    %547 = vmatpush1.msra.mxu0 %v234
    %548 = vmatprep.subr.mxu0 0.0
    %549 = vmatpush2.msra.mxu0 0.0
    %550 = vmatprep.subr.mxu0 0.0
    %551 = vmatpush2.msra.mxu0 0.0
    %552 = vmatprep.subr.mxu0 0.0
    %553 = vmatpush2.msra.mxu0 0.0
    %554 = vmatprep.subr.mxu0 0.0
    %555 = vmatpush2.msra.mxu0 0.0
    %556 = vmatprep.subr.mxu0 0.0
    %557 = vmatpush2.msra.mxu0 0.0
    %558 = vmatprep.subr.mxu0 0.0
    %559 = vmatpush2.msra.mxu0 0.0
    %560 = vmatprep.subr.mxu0 0.0
    %561 = vmatpush2.msra.mxu0 0.0
    %562 = vmatprep.subr.mxu0 0.0
    %563 = vmatpush2.msra.mxu0 0.0
    %564 = vmatprep.subr.mxu0 0.0
    %565 = vmatpush2.msra.mxu0 0.0
    %566 = vmatprep.subr.mxu0 0.0
    %567 = vmatpush2.msra.mxu0 0.0
    %568 = vmatprep.subr.mxu0 0.0
    %569 = vmatpush2.msra.mxu0 0.0
    %570 = vmatprep.subr.mxu0 0.0
    %571 = vmatpush2.msra.mxu0 0.0
    %572 = vmatprep.subr.mxu0 0.0
    %573 = vmatpush2.msra.mxu0 0.0
    %574 = vmatprep.subr.mxu0 0.0
    %575 = vmatpush2.msra.mxu0 0.0
    %576 = vmatprep.subr.mxu0 0.0
    %577 = vmatpush2.msra.mxu0 0.0
    %578 = vmatprep.subr.mxu0 0.0
    %579 = vmatpush2.msra.mxu0 0.0
    %580 = vmatprep.mubr.f32.mxu0 0.0
    %581 = vmatmul.mubr.f32.gmra.mxu0 %v512
    %v582 = vpop.f32.mrf.mxu0
    %v583 = vadd.f32 0.0, %v582
    %v584 = vpop.f32.mrf.mxu0
    %585 = vmatprep.mubr.f32.mxu0 0.0
    %586 = vmatmul.mubr.f32.gmra.mxu0 %v514
    %v587 = vpop.f32.mrf.mxu0
    %v588 = vadd.f32 0.0, %v587
    %v589 = vpop.f32.mrf.mxu0
    %590 = vdwg.mxu0
    %v591 = vadd.f32 %v196, %v583
    %v592 = vadd.f32 %v201, %v588
    %v593 = vxor.u32 %v591, 2147483648
    %v594 = vxor.u32 %v592, 2147483648
    %v595 = vmul.f32 %v593, 1.442695
    %v596 = vpow.pop %v595
    %v597 = vmul.f32 %v594, 1.442695
    %v598 = vpow.pop %v597
    %v599 = vadd.f32 %v596, 1.0
    %v600 = vadd.f32 %v598, 1.0
    %v601 = vrcp.pop %v599
    %v602 = vmul.f32 1.0, %v601
    %v603 = vrcp.pop %v600
    %v604 = vmul.f32 1.0, %v603
    %v605 = vmul.f32 %v602, 2.0
    %v606 = vmul.f32 %v604, 2.0
    %v607 = vsub.f32 %v605, 1.0
    %v608 = vsub.f32 %v606, 1.0
    %v609 = vmul.f32 %v602, %v492
    %v610 = vmul.f32 %v604, %v493
    %613 = vrot.lane.b32.xlu0 %v607, 32
    %v614 = vpop.permute.xlu0 %613
    %615 = vrot.lane.b32.xlu0 %v608, 32
    %v616 = vpop.permute.xlu0 %615
    %v619 = vmul.f32 %v602, %v614
    %v620 = vmul.f32 %v604, %v616
    %623 = vrot.lane.b32.xlu0 %v619, 32
    %v624 = vpop.permute.xlu0 %623
    %625 = vrot.lane.b32.xlu0 %v620, 32
    %v626 = vpop.permute.xlu0 %625
    %v629 = vadd.f32 %v609, %v624
    %v630 = vadd.f32 %v610, %v626
    %v631 = vtanh.pop %v629
    %v632 = vtanh.pop %v630
    %635 = vrot.lane.b32.xlu0 %v631, 32
    %v636 = vpop.permute.xlu0 %635
    %637 = vrot.lane.b32.xlu0 %v632, 32
    %v638 = vpop.permute.xlu0 %637
    %v641 = vmul.f32 %v602, %v636
    %v642 = vmul.f32 %v604, %v638
    %645 = vrot.lane.b32.xlu0 %v641, 64
    %v646 = vpop.permute.xlu0 %645
    %647 = vrot.lane.b32.xlu0 %v642, 64
    %v648 = vpop.permute.xlu0 %647
    %v649 = vsel %vm238, %v646, 0
    %v651 = vsel %vm238, %v648, 0
    %653 = vmatprep.subr.mxu0 0.0
    %654 = vmatpush1.msra.mxu0 0.0
    %655 = vmatprep.subr.mxu0 0.0
    %656 = vmatpush1.msra.mxu0 0.0
    %657 = vmatprep.subr.mxu0 0.0
    %658 = vmatpush1.msra.mxu0 0.0
    %659 = vmatprep.subr.mxu0 0.0
    %660 = vmatpush1.msra.mxu0 0.0
    %661 = vmatprep.subr.mxu0 0.0
    %662 = vmatpush1.msra.mxu0 0.0
    %663 = vmatprep.subr.mxu0 0.0
    %664 = vmatpush1.msra.mxu0 0.0
    %665 = vmatprep.subr.mxu0 0.0
    %666 = vmatpush1.msra.mxu0 0.0
    %667 = vmatprep.subr.mxu0 0.0
    %668 = vmatpush1.msra.mxu0 0.0
    %669 = vmatprep.subr.mxu0 0.0
    %670 = vmatpush1.msra.mxu0 0.0
    %671 = vmatprep.subr.mxu0 0.0
    %672 = vmatpush1.msra.mxu0 0.0
    %673 = vmatprep.subr.mxu0 0.0
    %674 = vmatpush1.msra.mxu0 0.0
    %675 = vmatprep.subr.mxu0 0.0
    %676 = vmatpush1.msra.mxu0 0.0
    %677 = vmatprep.subr.mxu0 0.0
    %678 = vmatpush1.msra.mxu0 %v237
    %679 = vmatprep.subr.mxu0 0.0
    %680 = vmatpush1.msra.mxu0 %v236
    %681 = vmatprep.subr.mxu0 0.0
    %682 = vmatpush1.msra.mxu0 %v235
    %683 = vmatprep.subr.mxu0 0.0
    %684 = vmatpush1.msra.mxu0 %v234
    %685 = vmatprep.subr.mxu0 0.0
    %686 = vmatpush2.msra.mxu0 0.0
    %687 = vmatprep.subr.mxu0 0.0
    %688 = vmatpush2.msra.mxu0 0.0
    %689 = vmatprep.subr.mxu0 0.0
    %690 = vmatpush2.msra.mxu0 0.0
    %691 = vmatprep.subr.mxu0 0.0
    %692 = vmatpush2.msra.mxu0 0.0
    %693 = vmatprep.subr.mxu0 0.0
    %694 = vmatpush2.msra.mxu0 0.0
    %695 = vmatprep.subr.mxu0 0.0
    %696 = vmatpush2.msra.mxu0 0.0
    %697 = vmatprep.subr.mxu0 0.0
    %698 = vmatpush2.msra.mxu0 0.0
    %699 = vmatprep.subr.mxu0 0.0
    %700 = vmatpush2.msra.mxu0 0.0
    %701 = vmatprep.subr.mxu0 0.0
    %702 = vmatpush2.msra.mxu0 0.0
    %703 = vmatprep.subr.mxu0 0.0
    %704 = vmatpush2.msra.mxu0 0.0
    %705 = vmatprep.subr.mxu0 0.0
    %706 = vmatpush2.msra.mxu0 0.0
    %707 = vmatprep.subr.mxu0 0.0
    %708 = vmatpush2.msra.mxu0 0.0
    %709 = vmatprep.subr.mxu0 0.0
    %710 = vmatpush2.msra.mxu0 0.0
    %711 = vmatprep.subr.mxu0 0.0
    %712 = vmatpush2.msra.mxu0 0.0
    %713 = vmatprep.subr.mxu0 0.0
    %714 = vmatpush2.msra.mxu0 0.0
    %715 = vmatprep.subr.mxu0 0.0
    %716 = vmatpush2.msra.mxu0 0.0
    %717 = vmatprep.mubr.f32.mxu0 0.0
    %718 = vmatmul.mubr.f32.gmra.mxu0 %v649
    %v719 = vpop.f32.mrf.mxu0
    %v720 = vadd.f32 0.0, %v719
    %v721 = vpop.f32.mrf.mxu0
    %722 = vmatprep.mubr.f32.mxu0 0.0
    %723 = vmatmul.mubr.f32.gmra.mxu0 %v651
    %v724 = vpop.f32.mrf.mxu0
    %v725 = vadd.f32 0.0, %v724
    %v726 = vpop.f32.mrf.mxu0
    %727 = vdwg.mxu0
    %v728 = vadd.f32 %v206, %v720
    %v729 = vadd.f32 %v211, %v725
    %v730 = vxor.u32 %v728, 2147483648
    %v731 = vxor.u32 %v729, 2147483648
    %v732 = vmul.f32 %v730, 1.442695
    %v733 = vpow.pop %v732
    %v734 = vmul.f32 %v731, 1.442695
    %v735 = vpow.pop %v734
    %v736 = vadd.f32 %v733, 1.0
    %v737 = vadd.f32 %v735, 1.0
    %v738 = vrcp.pop %v736
    %v739 = vmul.f32 1.0, %v738
    %v740 = vrcp.pop %v737
    %v741 = vmul.f32 1.0, %v740
    %v742 = vmul.f32 %v739, 2.0
    %v743 = vmul.f32 %v741, 2.0
    %v744 = vsub.f32 %v742, 1.0
    %v745 = vsub.f32 %v743, 1.0
    %v746 = vmul.f32 %v739, %v629
    %v747 = vmul.f32 %v741, %v630
    %750 = vrot.lane.b32.xlu0 %v744, 32
    %v751 = vpop.permute.xlu0 %750
    %752 = vrot.lane.b32.xlu0 %v745, 32
    %v753 = vpop.permute.xlu0 %752
    %v756 = vmul.f32 %v739, %v751
    %v757 = vmul.f32 %v741, %v753
    %760 = vrot.lane.b32.xlu0 %v756, 32
    %v761 = vpop.permute.xlu0 %760
    %762 = vrot.lane.b32.xlu0 %v757, 32
    %v763 = vpop.permute.xlu0 %762
    %v766 = vadd.f32 %v746, %v761
    %v767 = vadd.f32 %v747, %v763
    %v768 = vtanh.pop %v766
    %v769 = vtanh.pop %v767
    %772 = vrot.lane.b32.xlu0 %v768, 32
    %v773 = vpop.permute.xlu0 %772
    %774 = vrot.lane.b32.xlu0 %v769, 32
    %v775 = vpop.permute.xlu0 %774
    %v778 = vmul.f32 %v739, %v773
    %v779 = vmul.f32 %v741, %v775
    %782 = vrot.lane.b32.xlu0 %v778, 64
    %v783 = vpop.permute.xlu0 %782
    %784 = vrot.lane.b32.xlu0 %v779, 64
    %v785 = vpop.permute.xlu0 %784
    %v786 = vsel %vm238, %v783, 0
    %v788 = vsel %vm238, %v785, 0
    %790 = vmatprep.subr.mxu0 0.0
    %791 = vmatpush1.msra.mxu0 0.0
    %792 = vmatprep.subr.mxu0 0.0
    %793 = vmatpush1.msra.mxu0 0.0
    %794 = vmatprep.subr.mxu0 0.0
    %795 = vmatpush1.msra.mxu0 0.0
    %796 = vmatprep.subr.mxu0 0.0
    %797 = vmatpush1.msra.mxu0 0.0
    %798 = vmatprep.subr.mxu0 0.0
    %799 = vmatpush1.msra.mxu0 0.0
    %800 = vmatprep.subr.mxu0 0.0
    %801 = vmatpush1.msra.mxu0 0.0
    %802 = vmatprep.subr.mxu0 0.0
    %803 = vmatpush1.msra.mxu0 0.0
    %804 = vmatprep.subr.mxu0 0.0
    %805 = vmatpush1.msra.mxu0 0.0
    %806 = vmatprep.subr.mxu0 0.0
    %807 = vmatpush1.msra.mxu0 0.0
    %808 = vmatprep.subr.mxu0 0.0
    %809 = vmatpush1.msra.mxu0 0.0
    %810 = vmatprep.subr.mxu0 0.0
    %811 = vmatpush1.msra.mxu0 0.0
    %812 = vmatprep.subr.mxu0 0.0
    %813 = vmatpush1.msra.mxu0 0.0
    %814 = vmatprep.subr.mxu0 0.0
    %815 = vmatpush1.msra.mxu0 %v237
    %816 = vmatprep.subr.mxu0 0.0
    %817 = vmatpush1.msra.mxu0 %v236
    %818 = vmatprep.subr.mxu0 0.0
    %819 = vmatpush1.msra.mxu0 %v235
    %820 = vmatprep.subr.mxu0 0.0
    %821 = vmatpush1.msra.mxu0 %v234
    %822 = vmatprep.subr.mxu0 0.0
    %823 = vmatpush2.msra.mxu0 0.0
    %824 = vmatprep.subr.mxu0 0.0
    %825 = vmatpush2.msra.mxu0 0.0
    %826 = vmatprep.subr.mxu0 0.0
    %827 = vmatpush2.msra.mxu0 0.0
    %828 = vmatprep.subr.mxu0 0.0
    %829 = vmatpush2.msra.mxu0 0.0
    %830 = vmatprep.subr.mxu0 0.0
    %831 = vmatpush2.msra.mxu0 0.0
    %832 = vmatprep.subr.mxu0 0.0
    %833 = vmatpush2.msra.mxu0 0.0
    %834 = vmatprep.subr.mxu0 0.0
    %835 = vmatpush2.msra.mxu0 0.0
    %836 = vmatprep.subr.mxu0 0.0
    %837 = vmatpush2.msra.mxu0 0.0
    %838 = vmatprep.subr.mxu0 0.0
    %839 = vmatpush2.msra.mxu0 0.0
    %840 = vmatprep.subr.mxu0 0.0
    %841 = vmatpush2.msra.mxu0 0.0
    %842 = vmatprep.subr.mxu0 0.0
    %843 = vmatpush2.msra.mxu0 0.0
    %844 = vmatprep.subr.mxu0 0.0
    %845 = vmatpush2.msra.mxu0 0.0
    %846 = vmatprep.subr.mxu0 0.0
    %847 = vmatpush2.msra.mxu0 0.0
    %848 = vmatprep.subr.mxu0 0.0
    %849 = vmatpush2.msra.mxu0 0.0
    %850 = vmatprep.subr.mxu0 0.0
    %851 = vmatpush2.msra.mxu0 0.0
    %852 = vmatprep.subr.mxu0 0.0
    %853 = vmatpush2.msra.mxu0 0.0
    %854 = vmatprep.mubr.f32.mxu0 0.0
    %855 = vmatmul.mubr.f32.gmra.mxu0 %v786
    %v856 = vpop.f32.mrf.mxu0
    %v857 = vadd.f32 0.0, %v856
    %v858 = vpop.f32.mrf.mxu0
    %859 = vmatprep.mubr.f32.mxu0 0.0
    %860 = vmatmul.mubr.f32.gmra.mxu0 %v788
    %v861 = vpop.f32.mrf.mxu0
    %v862 = vadd.f32 0.0, %v861
    %v863 = vpop.f32.mrf.mxu0
    %864 = vdwg.mxu0
    %v865 = vadd.f32 %v216, %v857
    %v866 = vadd.f32 %v221, %v862
    %v867 = vxor.u32 %v865, 2147483648
    %v868 = vxor.u32 %v866, 2147483648
    %v869 = vmul.f32 %v867, 1.442695
    %v870 = vpow.pop %v869
    %v871 = vmul.f32 %v868, 1.442695
    %v872 = vpow.pop %v871
    %v873 = vadd.f32 %v870, 1.0
    %v874 = vadd.f32 %v872, 1.0
    %v875 = vrcp.pop %v873
    %v876 = vmul.f32 1.0, %v875
    %v877 = vrcp.pop %v874
    %v878 = vmul.f32 1.0, %v877
    %v879 = vmul.f32 %v876, 2.0
    %v880 = vmul.f32 %v878, 2.0
    %v881 = vsub.f32 %v879, 1.0
    %v882 = vsub.f32 %v880, 1.0
    %v883 = vmul.f32 %v876, %v766
    %v884 = vmul.f32 %v878, %v767
    %887 = vrot.lane.b32.xlu0 %v881, 32
    %v888 = vpop.permute.xlu0 %887
    %889 = vrot.lane.b32.xlu0 %v882, 32
    %v890 = vpop.permute.xlu0 %889
    %v893 = vmul.f32 %v876, %v888
    %v894 = vmul.f32 %v878, %v890
    %897 = vrot.lane.b32.xlu0 %v893, 32
    %v898 = vpop.permute.xlu0 %897
    %899 = vrot.lane.b32.xlu0 %v894, 32
    %v900 = vpop.permute.xlu0 %899
    %v903 = vadd.f32 %v883, %v898
    %v904 = vadd.f32 %v884, %v900
    %v905 = vtanh.pop %v903
    %v906 = vtanh.pop %v904
    %909 = vrot.lane.b32.xlu0 %v905, 32
    %v910 = vpop.permute.xlu0 %909
    %911 = vrot.lane.b32.xlu0 %v906, 32
    %v912 = vpop.permute.xlu0 %911
    %v915 = vmul.f32 %v876, %v910
    %v916 = vmul.f32 %v878, %v912
    %919 = vrot.lane.b32.xlu0 %v915, 64
    %v920 = vpop.permute.xlu0 %919
    %921 = vrot.lane.b32.xlu0 %v916, 64
    %v922 = vpop.permute.xlu0 %921
    %v923 = vsel %vm238, %v920, 0
    %v925 = vsel %vm238, %v922, 0
    %927 = vmatprep.subr.mxu0 0.0
    %928 = vmatpush1.msra.mxu0 0.0
    %929 = vmatprep.subr.mxu0 0.0
    %930 = vmatpush1.msra.mxu0 0.0
    %931 = vmatprep.subr.mxu0 0.0
    %932 = vmatpush1.msra.mxu0 0.0
    %933 = vmatprep.subr.mxu0 0.0
    %934 = vmatpush1.msra.mxu0 0.0
    %935 = vmatprep.subr.mxu0 0.0
    %936 = vmatpush1.msra.mxu0 0.0
    %937 = vmatprep.subr.mxu0 0.0
    %938 = vmatpush1.msra.mxu0 0.0
    %939 = vmatprep.subr.mxu0 0.0
    %940 = vmatpush1.msra.mxu0 0.0
    %941 = vmatprep.subr.mxu0 0.0
    %942 = vmatpush1.msra.mxu0 0.0
    %943 = vmatprep.subr.mxu0 0.0
    %944 = vmatpush1.msra.mxu0 0.0
    %945 = vmatprep.subr.mxu0 0.0
    %946 = vmatpush1.msra.mxu0 0.0
    %947 = vmatprep.subr.mxu0 0.0
    %948 = vmatpush1.msra.mxu0 0.0
    %949 = vmatprep.subr.mxu0 0.0
    %950 = vmatpush1.msra.mxu0 0.0
    %951 = vmatprep.subr.mxu0 0.0
    %952 = vmatpush1.msra.mxu0 %v237
    %953 = vmatprep.subr.mxu0 0.0
    %954 = vmatpush1.msra.mxu0 %v236
    %955 = vmatprep.subr.mxu0 0.0
    %956 = vmatpush1.msra.mxu0 %v235
    %957 = vmatprep.subr.mxu0 0.0
    %958 = vmatpush1.msra.mxu0 %v234
    %959 = vmatprep.subr.mxu0 0.0
    %960 = vmatpush2.msra.mxu0 0.0
    %961 = vmatprep.subr.mxu0 0.0
    %962 = vmatpush2.msra.mxu0 0.0
    %963 = vmatprep.subr.mxu0 0.0
    %964 = vmatpush2.msra.mxu0 0.0
    %965 = vmatprep.subr.mxu0 0.0
    %966 = vmatpush2.msra.mxu0 0.0
    %967 = vmatprep.subr.mxu0 0.0
    %968 = vmatpush2.msra.mxu0 0.0
    %969 = vmatprep.subr.mxu0 0.0
    %970 = vmatpush2.msra.mxu0 0.0
    %971 = vmatprep.subr.mxu0 0.0
    %972 = vmatpush2.msra.mxu0 0.0
    %973 = vmatprep.subr.mxu0 0.0
    %974 = vmatpush2.msra.mxu0 0.0
    %975 = vmatprep.subr.mxu0 0.0
    %976 = vmatpush2.msra.mxu0 0.0
    %977 = vmatprep.subr.mxu0 0.0
    %978 = vmatpush2.msra.mxu0 0.0
    %979 = vmatprep.subr.mxu0 0.0
    %980 = vmatpush2.msra.mxu0 0.0
    %981 = vmatprep.subr.mxu0 0.0
    %982 = vmatpush2.msra.mxu0 0.0
    %983 = vmatprep.subr.mxu0 0.0
    %984 = vmatpush2.msra.mxu0 0.0
    %985 = vmatprep.subr.mxu0 0.0
    %986 = vmatpush2.msra.mxu0 0.0
    %987 = vmatprep.subr.mxu0 0.0
    %988 = vmatpush2.msra.mxu0 0.0
    %989 = vmatprep.subr.mxu0 0.0
    %990 = vmatpush2.msra.mxu0 0.0
    %991 = vmatprep.mubr.f32.mxu0 0.0
    %992 = vmatmul.mubr.f32.gmra.mxu0 %v923
    %v993 = vpop.f32.mrf.mxu0
    %v994 = vadd.f32 0.0, %v993
    %v995 = vpop.f32.mrf.mxu0
    %996 = vmatprep.mubr.f32.mxu0 0.0
    %997 = vmatmul.mubr.f32.gmra.mxu0 %v925
    %v998 = vpop.f32.mrf.mxu0
    %v999 = vadd.f32 0.0, %v998
    %v1000 = vpop.f32.mrf.mxu0
    %1001 = vdwg.mxu0
    %v1002 = vadd.f32 %v226, %v994
    %v1003 = vadd.f32 %v231, %v999
    %v1004 = vxor.u32 %v1002, 2147483648
    %v1005 = vxor.u32 %v1003, 2147483648
    %v1006 = vmul.f32 %v1004, 1.442695
    %v1007 = vpow.pop %v1006
    %v1008 = vmul.f32 %v1005, 1.442695
    %v1009 = vpow.pop %v1008
    %v1010 = vadd.f32 %v1007, 1.0
    %v1011 = vadd.f32 %v1009, 1.0
    %v1012 = vrcp.pop %v1010
    %v1013 = vmul.f32 1.0, %v1012
    %v1014 = vrcp.pop %v1011
    %v1015 = vmul.f32 1.0, %v1014
    %v1016 = vmul.f32 %v1013, 2.0
    %v1017 = vmul.f32 %v1015, 2.0
    %v1018 = vsub.f32 %v1016, 1.0
    %v1019 = vsub.f32 %v1017, 1.0
    %v1020 = vmul.f32 %v1013, %v903
    %v1021 = vmul.f32 %v1015, %v904
    %1024 = vrot.lane.b32.xlu0 %v1018, 32
    %v1025 = vpop.permute.xlu0 %1024
    %1026 = vrot.lane.b32.xlu0 %v1019, 32
    %v1027 = vpop.permute.xlu0 %1026
    %v1030 = vmul.f32 %v1013, %v1025
    %v1031 = vmul.f32 %v1015, %v1027
    %1034 = vrot.lane.b32.xlu0 %v1030, 32
    %v1035 = vpop.permute.xlu0 %1034
    %1036 = vrot.lane.b32.xlu0 %v1031, 32
    %v1037 = vpop.permute.xlu0 %1036
    %v1040 = vadd.f32 %v1020, %v1035
    %v1041 = vadd.f32 %v1021, %v1037
    %v1042 = vtanh.pop %v1040
    %v1043 = vtanh.pop %v1041
    %1046 = vrot.lane.b32.xlu0 %v1042, 32
    %v1047 = vpop.permute.xlu0 %1046
    %1048 = vrot.lane.b32.xlu0 %v1043, 32
    %v1049 = vpop.permute.xlu0 %1048
    %v1052 = vmul.f32 %v1013, %v1047
    %v1053 = vmul.f32 %v1015, %v1049
    %v1054 = vld [vmem:[%s4] sm:$0xff]
    %v1055 = vld [vmem:[%s4 + $0x8] sm:$0xff]
    %v1056 = vld [vmem:[%s4 + $0x10] sm:$0xff]
    %v1057 = vld [vmem:[%s4 + $0x18] sm:$0xff]
    %v1058 = vld [vmem:[%s5] sm:$0x1]
    %v1060 = vlaneseq
    %v1061 = vshrl.u32 %v1060, 7
    %v1062 = vsub.s32 0, %v1061
    %v1063 = vrot.slane %v1058, %v1062
    %1067 = vrot.lane.b32.xlu0 %v1052, 64
    %v1068 = vpop.permute.xlu0 %1067
    %1069 = vrot.lane.b32.xlu0 %v1053, 64
    %v1070 = vpop.permute.xlu0 %1069
    %v1071 = vsel %vm238, %v1068, 0
    %v1073 = vsel %vm238, %v1070, 0
    %1075 = vmatprep.subr.mxu0 0.0
    %1076 = vmatpush1.msra.mxu0 0.0
    %1077 = vmatprep.subr.mxu0 0.0
    %1078 = vmatpush1.msra.mxu0 0.0
    %1079 = vmatprep.subr.mxu0 0.0
    %1080 = vmatpush1.msra.mxu0 0.0
    %1081 = vmatprep.subr.mxu0 0.0
    %1082 = vmatpush1.msra.mxu0 0.0
    %1083 = vmatprep.subr.mxu0 0.0
    %1084 = vmatpush1.msra.mxu0 0.0
    %1085 = vmatprep.subr.mxu0 0.0
    %1086 = vmatpush1.msra.mxu0 0.0
    %1087 = vmatprep.subr.mxu0 0.0
    %1088 = vmatpush1.msra.mxu0 0.0
    %1089 = vmatprep.subr.mxu0 0.0
    %1090 = vmatpush1.msra.mxu0 0.0
    %1091 = vmatprep.subr.mxu0 0.0
    %1092 = vmatpush1.msra.mxu0 0.0
    %1093 = vmatprep.subr.mxu0 0.0
    %1094 = vmatpush1.msra.mxu0 0.0
    %1095 = vmatprep.subr.mxu0 0.0
    %1096 = vmatpush1.msra.mxu0 0.0
    %1097 = vmatprep.subr.mxu0 0.0
    %1098 = vmatpush1.msra.mxu0 0.0
    %1099 = vmatprep.subr.mxu0 0.0
    %1100 = vmatpush1.msra.mxu0 %v1057
    %1101 = vmatprep.subr.mxu0 0.0
    %1102 = vmatpush1.msra.mxu0 %v1056
    %1103 = vmatprep.subr.mxu0 0.0
    %1104 = vmatpush1.msra.mxu0 %v1055
    %1105 = vmatprep.subr.mxu0 0.0
    %1106 = vmatpush1.msra.mxu0 %v1054
    %1107 = vmatprep.subr.mxu0 0.0
    %1108 = vmatpush2.msra.mxu0 0.0
    %1109 = vmatprep.subr.mxu0 0.0
    %1110 = vmatpush2.msra.mxu0 0.0
    %1111 = vmatprep.subr.mxu0 0.0
    %1112 = vmatpush2.msra.mxu0 0.0
    %1113 = vmatprep.subr.mxu0 0.0
    %1114 = vmatpush2.msra.mxu0 0.0
    %1115 = vmatprep.subr.mxu0 0.0
    %1116 = vmatpush2.msra.mxu0 0.0
    %1117 = vmatprep.subr.mxu0 0.0
    %1118 = vmatpush2.msra.mxu0 0.0
    %1119 = vmatprep.subr.mxu0 0.0
    %1120 = vmatpush2.msra.mxu0 0.0
    %1121 = vmatprep.subr.mxu0 0.0
    %1122 = vmatpush2.msra.mxu0 0.0
    %1123 = vmatprep.subr.mxu0 0.0
    %1124 = vmatpush2.msra.mxu0 0.0
    %1125 = vmatprep.subr.mxu0 0.0
    %1126 = vmatpush2.msra.mxu0 0.0
    %1127 = vmatprep.subr.mxu0 0.0
    %1128 = vmatpush2.msra.mxu0 0.0
    %1129 = vmatprep.subr.mxu0 0.0
    %1130 = vmatpush2.msra.mxu0 0.0
    %1131 = vmatprep.subr.mxu0 0.0
    %1132 = vmatpush2.msra.mxu0 0.0
    %1133 = vmatprep.subr.mxu0 0.0
    %1134 = vmatpush2.msra.mxu0 0.0
    %1135 = vmatprep.subr.mxu0 0.0
    %1136 = vmatpush2.msra.mxu0 0.0
    %1137 = vmatprep.subr.mxu0 0.0
    %1138 = vmatpush2.msra.mxu0 0.0
    %1139 = vmatprep.mubr.f32.mxu0 0.0
    %1140 = vmatmul.mubr.f32.gmra.mxu0 %v1071
    %v1141 = vpop.f32.mrf.mxu0
    %v1142 = vadd.f32 %v1063, %v1141
    %v1143 = vpop.f32.mrf.mxu0
    %1144 = vmatprep.mubr.f32.mxu0 0.0
    %1145 = vmatmul.mubr.f32.gmra.mxu0 %v1073
    %v1146 = vpop.f32.mrf.mxu0
    %v1147 = vadd.f32 %v1063, %v1146
    %v1148 = vpop.f32.mrf.mxu0
    %1149 = vdwg.mxu0
    %vm1150 = vcmask 64512
    %v1151 = vsel %vm1150, %v1142, -inf
    %1152 = vmax.xlane.f32.xlu0 %v1151
    %v1153 = vpop.xlane.xlu0 %1152
    %v1154 = vsel %vm1150, %v1147, -inf
    %1155 = vmax.xlane.f32.xlu0 %v1154
    %v1156 = vpop.xlane.xlu0 %1155
    %v1157 = vsub.f32 %v1142, %v1153
    %v1158 = vsub.f32 %v1147, %v1156
    %v1159 = vmul.f32 %v1157, 1.442695
    %v1160 = vpow.pop %v1159
    %v1161 = vmul.f32 %v1158, 1.442695
    %v1162 = vpow.pop %v1161
    %v1163 = vsel %vm1150, %v1160, 0.0
    %1164 = vadd.xlane.f32.xlu0 %v1163
    %v1165 = vpop.xlane.xlu0 %1164
    %v1166 = vsel %vm1150, %v1162, 0.0
    %1167 = vadd.xlane.f32.xlu0 %v1166
    %v1168 = vpop.xlane.xlu0 %1167
    %v1169 = vrcp.pop %v1165
    %v1170 = vmul.f32 %v1160, %v1169
    %v1171 = vrcp.pop %v1168
    %v1172 = vmul.f32 %v1162, %v1171
    %1173 = vst.msk [vmem:[%s6] sm:$0xff] %vm1150, %v1170
    %1174 = vst.msk [vmem:[%s6 + $0x8] sm:$0xff] %vm1150, %v1172
    // Predicated region
    $region34: #{tpu_custom_call.1} parent=1 // pred_check
      _
    $region35: #{tpu_custom_call.1} parent=1 // pred_check_branch
      %1176 = sbr.rel (0) target = $region37
    $region36: #{tpu_custom_call.1} parent=1 // pred_region
      _
    $region37: #{tpu_custom_call.1} parent=1 // pred_fallthru
      _
    // Predicated region
    $region38: #{tpu_custom_call.1} parent=1 // pred_check
      _
    $region39: #{tpu_custom_call.1} parent=1 // pred_check_branch
      %1178 = sbr.rel (0) target = $region41
    $region40: #{tpu_custom_call.1} parent=1 // pred_region
      _
    $region41: #{tpu_custom_call.1} parent=1 // pred_fallthru
      _
    %1179 = vsyncpa [#allocation3], 1
    %1180 = vsyncpa [#allocation5], 1

</llo_original>
